<compile_context>
chip_gen: v6e
topology: v6e:2x2x1
jax: 0.10.0
libtpu: 0.0.40
codegen_flags: <defaults>
</compile_context>

<pallas_src>
import jax
import jax.numpy as jnp
from jax.experimental import pallas as pl
from jax.experimental.pallas import tpu as pltpu


def _round_up(x, m):
    return ((x + m - 1) // m) * m


# ---------------------------------------------------------------------------
# Kernel
#   clin_ref [tile_b, C]  img_ref [tile_b, I]          (f32 activations)
#   w0c_ref  [C, PAD]     w0i_ref [I, PAD]             (bf16 layer-0 weights)
#   w_ref    [5, PAD, PAD]                             (bf16: 3 fused hidden,
#                                                        combined hidden, head)
#   b_ref    [6, 1, PAD]                               (f32 biases)
#   o_ref    [tile_b, 1]                               (f32 output column)
# ---------------------------------------------------------------------------
def _icu_kernel(clin_ref, img_ref, w0c_ref, w0i_ref, w_ref, b_ref, o_ref):
    # Layer 0: fused per-branch input projections (== concat(clin, img) @ W0
    # with W0 block-diagonal), no lane concat / input padding needed.
    x = (
        jnp.dot(clin_ref[...].astype(jnp.bfloat16), w0c_ref[...],
                preferred_element_type=jnp.float32)
        + jnp.dot(img_ref[...].astype(jnp.bfloat16), w0i_ref[...],
                  preferred_element_type=jnp.float32)
        + b_ref[0]
    )
    x = jnp.maximum(x, 0.0)

    # Layers 1..3: fused block-diagonal branch layers; layer 4: combined hidden.
    for k in range(4):
        x = jnp.maximum(
            jnp.dot(x.astype(jnp.bfloat16), w_ref[k],
                    preferred_element_type=jnp.float32)
            + b_ref[k + 1],
            0.0,
        )

    # Head (no ReLU): full-width dot, keep only the real column 0 for writeback.
    y = (
        jnp.dot(x.astype(jnp.bfloat16), w_ref[4],
                preferred_element_type=jnp.float32)
        + b_ref[5]
    )
    o_ref[...] = y[:, :1]


# ---------------------------------------------------------------------------
# Wrapper
# ---------------------------------------------------------------------------
def icu_model_no_attention(clinical_data, img_data, packed_params,
                           *, max_tile_b=2048):
    """clinical_data [B, C], img_data [B, I]; packed_params from pack_params()."""
    w0c, w0i, w_slab, b_slab = packed_params
    B, C = clinical_data.shape
    I = img_data.shape[1]
    pad = w_slab.shape[-1]
    n_slab = w_slab.shape[0]

    clinical_data = clinical_data.astype(jnp.float32)
    img_data = img_data.astype(jnp.float32)

    # Tile selection: multiple of 8; at least 2 grid steps when B >= 16 so the
    # "parallel" batch axis spans both TensorCores on v7x (no-op on v5e/v6e).
    pad_b = _round_up(B, 8)
    if B >= 16:
        tile_b = min(max_tile_b, _round_up(pl.cdiv(pad_b, 2), 8))
    else:
        tile_b = pad_b
    grid = (pl.cdiv(B, tile_b),)   # ragged last tile handled by Pallas masking

    out = pl.pallas_call(
        _icu_kernel,
        out_shape=jax.ShapeDtypeStruct((B, 1), jnp.float32),
        grid_spec=pltpu.PrefetchScalarGridSpec(
            num_scalar_prefetch=0,
            grid=grid,
            in_specs=[
                # activations: stream row tiles (last dim == full array dim)
                pl.BlockSpec((tile_b, C), lambda i: (i, 0)),
                pl.BlockSpec((tile_b, I), lambda i: (i, 0)),
                # weights / biases: constant index_maps -> resident in VMEM
                pl.BlockSpec((C, pad), lambda i: (0, 0)),
                pl.BlockSpec((I, pad), lambda i: (0, 0)),
                pl.BlockSpec((n_slab, pad, pad), lambda i: (0, 0, 0)),
                pl.BlockSpec((n_slab + 1, 1, pad), lambda i: (0, 0, 0)),
            ],
            out_specs=pl.BlockSpec((tile_b, 1), lambda i: (i, 0)),
        ),
        compiler_params=pltpu.CompilerParams(
            dimension_semantics=("parallel",)),
    )(clinical_data, img_data, w0c, w0i, w_slab, b_slab)

    return out


# ---------------------------------------------------------------------------
# Parameter init (PyTorch-Linear-like) and block-diagonal packing
# ---------------------------------------------------------------------------
def init_params(key, clinical_input_dim, img_input_dim, hidden_dims):
    """Per-layer params: weights [in_dim, out_dim], biases [1, out_dim]."""
    layer_dims = (
        # clinical_net
        [(clinical_input_dim, hidden_dims[0]),
         (hidden_dims[0], hidden_dims[1]),
         (hidden_dims[1], hidden_dims[2]),
         (hidden_dims[2], hidden_dims[3])] +
        # img_net
        [(img_input_dim, hidden_dims[0]),
         (hidden_dims[0], hidden_dims[1]),
         (hidden_dims[1], hidden_dims[2]),
         (hidden_dims[2], hidden_dims[3])] +
        # combined_net
        [(hidden_dims[3] * 2, hidden_dims[4]),
         (hidden_dims[4], 1)]
    )
    params = []
    for (din, dout) in layer_dims:
        key, kw, kb = jax.random.split(key, 3)
        scale = 1.0 / jnp.sqrt(jnp.float32(din))   # ~ PyTorch Linear default range
        w = jax.random.uniform(kw, (din, dout), jnp.float32, -scale, scale)
        b = jax.random.uniform(kb, (1, dout), jnp.float32, -scale, scale)
        params += [w, b]
    return params


def pack_params(params, clinical_input_dim, img_input_dim, hidden_dims):
    """Pack the 20 per-layer params into:
         w0c [C, PAD], w0i [I, PAD]     (bf16 layer-0 per-branch projections)
         w_slab [5, PAD, PAD]           (bf16: 3 fused block-diag, combined, head)
         b_slab [6, 1, PAD]             (f32 biases, layer 0 .. head)"""
    (cw1, cb1, cw2, cb2, cw3, cb3, cw4, cb4,
     iw1, ib1, iw2, ib2, iw3, ib3, iw4, ib4,
     fw1, fb1, fw2, fb2) = params

    h = hidden_dims
    pad = _round_up(max(2 * h[0], 2 * h[1], 2 * h[2], 2 * h[3], h[4], 8), 128)

    # Layer 0: separate per-branch projections, output layout [clin_h0 | img_h0 | 0].
    w0c = jnp.zeros((clinical_input_dim, pad), jnp.float32).at[:, :h[0]].set(cw1)
    w0i = jnp.zeros((img_input_dim, pad), jnp.float32).at[:, h[0]:2 * h[0]].set(iw1)

    n_slab = 5
    w_slab = jnp.zeros((n_slab, pad, pad), jnp.float32)
    b_slab = jnp.zeros((n_slab + 1, 1, pad), jnp.float32)

    b_slab = b_slab.at[0, :, :h[0]].set(cb1)
    b_slab = b_slab.at[0, :, h[0]:2 * h[0]].set(ib1)

    # Slab layers 0..2: fused block-diagonal branch hidden layers.
    c_ws, c_bs = [cw2, cw3, cw4], [cb2, cb3, cb4]
    i_ws, i_bs = [iw2, iw3, iw4], [ib2, ib3, ib4]
    for k in range(3):
        hp, hk = h[k], h[k + 1]
        w_slab = w_slab.at[k, :hp, :hk].set(c_ws[k])
        w_slab = w_slab.at[k, hp:2 * hp, hk:2 * hk].set(i_ws[k])
        b_slab = b_slab.at[k + 1, :, :hk].set(c_bs[k])
        b_slab = b_slab.at[k + 1, :, hk:2 * hk].set(i_bs[k])

    # Slab layer 3: combined hidden; consumes cols [0, 2*h3) = [clin | img] feats.
    w_slab = w_slab.at[3, :2 * h[3], :h[4]].set(fw1)
    b_slab = b_slab.at[4, :, :h[4]].set(fb1)

    # Slab layer 4: final head -> column 0.
    w_slab = w_slab.at[4, :h[4], :1].set(fw2)
    b_slab = b_slab.at[5, :, :1].set(fb2)

    return (w0c.astype(jnp.bfloat16), w0i.astype(jnp.bfloat16),
            w_slab.astype(jnp.bfloat16), b_slab)


# ---------------------------------------------------------------------------
# Pure-JAX references for correctness checking
# ---------------------------------------------------------------------------
def reference_forward_f32(clinical_data, img_data, params):
    def linear(x, w, b, relu):
        y = x @ w + b
        return jnp.maximum(y, 0.0) if relu else y

    p = params
    c = clinical_data
    for i in range(4):
        c = linear(c, p[2 * i], p[2 * i + 1], True)
    m = img_data
    for i in range(4, 8):
        m = linear(m, p[2 * i], p[2 * i + 1], True)
    z = jnp.concatenate([c, m], axis=1)
    z = linear(z, p[16], p[17], True)
    return linear(z, p[18], p[19], False)


def reference_forward_bf16(clinical_data, img_data, params):
    """Matches the kernel's mixed precision: bf16 operands, f32 accumulation."""
    def linear(x, w, b, relu):
        y = jnp.dot(x.astype(jnp.bfloat16), w.astype(jnp.bfloat16),
                    preferred_element_type=jnp.float32) + b
        return jnp.maximum(y, 0.0) if relu else y

    p = params
    c = clinical_data.astype(jnp.float32)
    for i in range(4):
        c = linear(c, p[2 * i], p[2 * i + 1], True)
    m = img_data.astype(jnp.float32)
    for i in range(4, 8):
        m = linear(m, p[2 * i], p[2 * i + 1], True)
    z = jnp.concatenate([c, m], axis=1)
    z = linear(z, p[16], p[17], True)
    return linear(z, p[18], p[19], False)


if __name__ == "__main__":
    clinical_input_dim = 16
    img_input_dim = 64
    hidden_dims = [32, 32, 32, 32, 32]
    batch = 8

    key = jax.random.PRNGKey(0)
    key, kc, ki, kp = jax.random.split(key, 4)
    clinical_data = jax.random.normal(kc, (batch, clinical_input_dim), jnp.float32)
    img_data = jax.random.normal(ki, (batch, img_input_dim), jnp.float32)
    params = init_params(kp, clinical_input_dim, img_input_dim, hidden_dims)

    packed = pack_params(params, clinical_input_dim, img_input_dim, hidden_dims)

    out = icu_model_no_attention(clinical_data, img_data, packed)
    out = jax.block_until_ready(out)

    assert out.shape == (batch, 1), out.shape
    ref_bf16 = reference_forward_bf16(clinical_data, img_data, params)
    assert jnp.allclose(out, ref_bf16, atol=1e-3, rtol=1e-3), \
        "mismatch vs. bf16-matched JAX reference"
    # bf16 matmuls => tolerance-level (not bit-level) agreement with pure f32:
    ref_f32 = reference_forward_f32(clinical_data, img_data, params)
    assert jnp.allclose(out, ref_f32, atol=5e-2, rtol=5e-2), \
        "mismatch vs. f32 JAX reference"

    # TODO(synk): Dropout is treated as inference-mode identity (no RNG masking in-kernel).
    print("KERNEL_OK")
</pallas_src>

<mosaic_0001>
module attributes {stable_mosaic.version = 11 : i64} {
  func.func @_icu_kernel(%arg0: i32, %arg1: memref<8x16xf32, #tpu.memory_space<vmem>>, %arg2: memref<8x64xf32, #tpu.memory_space<vmem>>, %arg3: memref<16x128xbf16, #tpu.memory_space<vmem>>, %arg4: memref<64x128xbf16, #tpu.memory_space<vmem>>, %arg5: memref<5x128x128xbf16, #tpu.memory_space<vmem>>, %arg6: memref<6x1x128xf32, #tpu.memory_space<vmem>>, %arg7: memref<8x1xf32, #tpu.memory_space<vmem>>) attributes {dimension_semantics = [#tpu.dimension_semantics<parallel>], iteration_bounds = array<i64: 1>, scalar_prefetch = 0 : i64, scratch_operands = 0 : i64, tpu.core_type = #tpu.core_type<tc>, window_params = [{transform_indices = @transform_0, window_bounds = array<i64: 8, 16>}, {transform_indices = @transform_1, window_bounds = array<i64: 8, 64>}, {pipeline_mode = #tpu.pipeline_mode<synchronous>, transform_indices = @transform_2, window_bounds = array<i64: 16, 128>}, {pipeline_mode = #tpu.pipeline_mode<synchronous>, transform_indices = @transform_3, window_bounds = array<i64: 64, 128>}, {pipeline_mode = #tpu.pipeline_mode<synchronous>, transform_indices = @transform_4, window_bounds = array<i64: 5, 128, 128>}, {pipeline_mode = #tpu.pipeline_mode<synchronous>, transform_indices = @transform_5, window_bounds = array<i64: 6, 1, 128>}, {transform_indices = @transform_6, window_bounds = array<i64: 8, 1>}]} {
    %c0 = arith.constant 0 : index
    %c0_0 = arith.constant 0 : index
    %0 = vector.load %arg1[%c0, %c0_0] : memref<8x16xf32, #tpu.memory_space<vmem>>, vector<8x16xf32>
    %1 = arith.truncf %0 : vector<8x16xf32> to vector<8x16xbf16>
    %c0_1 = arith.constant 0 : index
    %c0_2 = arith.constant 0 : index
    %2 = vector.load %arg3[%c0_1, %c0_2] : memref<16x128xbf16, #tpu.memory_space<vmem>>, vector<16x128xbf16>
    %cst = arith.constant dense<0.000000e+00> : vector<8x128xf32>
    %3 = tpu.matmul %1, %2, %cst {dimension_numbers = #tpu.dot_dimension_numbers<[1], [0], [0], [1], [0, 0, 1, 1], [], []>} : vector<8x16xbf16>, vector<16x128xbf16>, vector<8x128xf32> -> vector<8x128xf32>
    %c0_3 = arith.constant 0 : index
    %c0_4 = arith.constant 0 : index
    %4 = vector.load %arg2[%c0_3, %c0_4] : memref<8x64xf32, #tpu.memory_space<vmem>>, vector<8x64xf32>
    %5 = arith.truncf %4 : vector<8x64xf32> to vector<8x64xbf16>
    %c0_5 = arith.constant 0 : index
    %c0_6 = arith.constant 0 : index
    %6 = vector.load %arg4[%c0_5, %c0_6] : memref<64x128xbf16, #tpu.memory_space<vmem>>, vector<64x128xbf16>
    %cst_7 = arith.constant dense<0.000000e+00> : vector<8x128xf32>
    %7 = tpu.matmul %5, %6, %cst_7 {dimension_numbers = #tpu.dot_dimension_numbers<[1], [0], [0], [1], [0, 0, 1, 1], [], []>} : vector<8x64xbf16>, vector<64x128xbf16>, vector<8x128xf32> -> vector<8x128xf32>
    %8 = arith.addf %3, %7 : vector<8x128xf32>
    %c0_8 = arith.constant 0 : index
    %c0_9 = arith.constant 0 : index
    %c0_10 = arith.constant 0 : index
    %9 = vector.load %arg6[%c0_8, %c0_9, %c0_10] : memref<6x1x128xf32, #tpu.memory_space<vmem>>, vector<1x1x128xf32>
    %10 = vector.shape_cast %9 : vector<1x1x128xf32> to vector<1x128xf32>
    %11 = vector.broadcast %10 : vector<1x128xf32> to vector<8x128xf32>
    %12 = arith.addf %8, %11 : vector<8x128xf32>
    %cst_11 = arith.constant 0.000000e+00 : f32
    %13 = vector.broadcast %cst_11 : f32 to vector<8x128xf32>
    %14 = arith.maximumf %12, %13 : vector<8x128xf32>
    %15 = arith.truncf %14 : vector<8x128xf32> to vector<8x128xbf16>
    %c0_12 = arith.constant 0 : index
    %c0_13 = arith.constant 0 : index
    %c0_14 = arith.constant 0 : index
    %16 = vector.load %arg5[%c0_12, %c0_13, %c0_14] : memref<5x128x128xbf16, #tpu.memory_space<vmem>>, vector<1x128x128xbf16>
    %17 = vector.shape_cast %16 : vector<1x128x128xbf16> to vector<128x128xbf16>
    %cst_15 = arith.constant dense<0.000000e+00> : vector<8x128xf32>
    %18 = tpu.matmul %15, %17, %cst_15 {dimension_numbers = #tpu.dot_dimension_numbers<[1], [0], [0], [1], [0, 0, 1, 1], [], []>} : vector<8x128xbf16>, vector<128x128xbf16>, vector<8x128xf32> -> vector<8x128xf32>
    %c1 = arith.constant 1 : index
    %c0_16 = arith.constant 0 : index
    %c0_17 = arith.constant 0 : index
    %19 = vector.load %arg6[%c1, %c0_16, %c0_17] : memref<6x1x128xf32, #tpu.memory_space<vmem>>, vector<1x1x128xf32>
    %20 = vector.shape_cast %19 : vector<1x1x128xf32> to vector<1x128xf32>
    %21 = vector.broadcast %20 : vector<1x128xf32> to vector<8x128xf32>
    %22 = arith.addf %18, %21 : vector<8x128xf32>
    %cst_18 = arith.constant 0.000000e+00 : f32
    %23 = vector.broadcast %cst_18 : f32 to vector<8x128xf32>
    %24 = arith.maximumf %22, %23 : vector<8x128xf32>
    %25 = arith.truncf %24 : vector<8x128xf32> to vector<8x128xbf16>
    %c1_19 = arith.constant 1 : index
    %c0_20 = arith.constant 0 : index
    %c0_21 = arith.constant 0 : index
    %26 = vector.load %arg5[%c1_19, %c0_20, %c0_21] : memref<5x128x128xbf16, #tpu.memory_space<vmem>>, vector<1x128x128xbf16>
    %27 = vector.shape_cast %26 : vector<1x128x128xbf16> to vector<128x128xbf16>
    %cst_22 = arith.constant dense<0.000000e+00> : vector<8x128xf32>
    %28 = tpu.matmul %25, %27, %cst_22 {dimension_numbers = #tpu.dot_dimension_numbers<[1], [0], [0], [1], [0, 0, 1, 1], [], []>} : vector<8x128xbf16>, vector<128x128xbf16>, vector<8x128xf32> -> vector<8x128xf32>
    %c2 = arith.constant 2 : index
    %c0_23 = arith.constant 0 : index
    %c0_24 = arith.constant 0 : index
    %29 = vector.load %arg6[%c2, %c0_23, %c0_24] : memref<6x1x128xf32, #tpu.memory_space<vmem>>, vector<1x1x128xf32>
    %30 = vector.shape_cast %29 : vector<1x1x128xf32> to vector<1x128xf32>
    %31 = vector.broadcast %30 : vector<1x128xf32> to vector<8x128xf32>
    %32 = arith.addf %28, %31 : vector<8x128xf32>
    %cst_25 = arith.constant 0.000000e+00 : f32
    %33 = vector.broadcast %cst_25 : f32 to vector<8x128xf32>
    %34 = arith.maximumf %32, %33 : vector<8x128xf32>
    %35 = arith.truncf %34 : vector<8x128xf32> to vector<8x128xbf16>
    %c2_26 = arith.constant 2 : index
    %c0_27 = arith.constant 0 : index
    %c0_28 = arith.constant 0 : index
    %36 = vector.load %arg5[%c2_26, %c0_27, %c0_28] : memref<5x128x128xbf16, #tpu.memory_space<vmem>>, vector<1x128x128xbf16>
    %37 = vector.shape_cast %36 : vector<1x128x128xbf16> to vector<128x128xbf16>
    %cst_29 = arith.constant dense<0.000000e+00> : vector<8x128xf32>
    %38 = tpu.matmul %35, %37, %cst_29 {dimension_numbers = #tpu.dot_dimension_numbers<[1], [0], [0], [1], [0, 0, 1, 1], [], []>} : vector<8x128xbf16>, vector<128x128xbf16>, vector<8x128xf32> -> vector<8x128xf32>
    %c3 = arith.constant 3 : index
    %c0_30 = arith.constant 0 : index
    %c0_31 = arith.constant 0 : index
    %39 = vector.load %arg6[%c3, %c0_30, %c0_31] : memref<6x1x128xf32, #tpu.memory_space<vmem>>, vector<1x1x128xf32>
    %40 = vector.shape_cast %39 : vector<1x1x128xf32> to vector<1x128xf32>
    %41 = vector.broadcast %40 : vector<1x128xf32> to vector<8x128xf32>
    %42 = arith.addf %38, %41 : vector<8x128xf32>
    %cst_32 = arith.constant 0.000000e+00 : f32
    %43 = vector.broadcast %cst_32 : f32 to vector<8x128xf32>
    %44 = arith.maximumf %42, %43 : vector<8x128xf32>
    %45 = arith.truncf %44 : vector<8x128xf32> to vector<8x128xbf16>
    %c3_33 = arith.constant 3 : index
    %c0_34 = arith.constant 0 : index
    %c0_35 = arith.constant 0 : index
    %46 = vector.load %arg5[%c3_33, %c0_34, %c0_35] : memref<5x128x128xbf16, #tpu.memory_space<vmem>>, vector<1x128x128xbf16>
    %47 = vector.shape_cast %46 : vector<1x128x128xbf16> to vector<128x128xbf16>
    %cst_36 = arith.constant dense<0.000000e+00> : vector<8x128xf32>
    %48 = tpu.matmul %45, %47, %cst_36 {dimension_numbers = #tpu.dot_dimension_numbers<[1], [0], [0], [1], [0, 0, 1, 1], [], []>} : vector<8x128xbf16>, vector<128x128xbf16>, vector<8x128xf32> -> vector<8x128xf32>
    %c4 = arith.constant 4 : index
    %c0_37 = arith.constant 0 : index
    %c0_38 = arith.constant 0 : index
    %49 = vector.load %arg6[%c4, %c0_37, %c0_38] : memref<6x1x128xf32, #tpu.memory_space<vmem>>, vector<1x1x128xf32>
    %50 = vector.shape_cast %49 : vector<1x1x128xf32> to vector<1x128xf32>
    %51 = vector.broadcast %50 : vector<1x128xf32> to vector<8x128xf32>
    %52 = arith.addf %48, %51 : vector<8x128xf32>
    %cst_39 = arith.constant 0.000000e+00 : f32
    %53 = vector.broadcast %cst_39 : f32 to vector<8x128xf32>
    %54 = arith.maximumf %52, %53 : vector<8x128xf32>
    %55 = arith.truncf %54 : vector<8x128xf32> to vector<8x128xbf16>
    %c4_40 = arith.constant 4 : index
    %c0_41 = arith.constant 0 : index
    %c0_42 = arith.constant 0 : index
    %56 = vector.load %arg5[%c4_40, %c0_41, %c0_42] : memref<5x128x128xbf16, #tpu.memory_space<vmem>>, vector<1x128x128xbf16>
    %57 = vector.shape_cast %56 : vector<1x128x128xbf16> to vector<128x128xbf16>
    %cst_43 = arith.constant dense<0.000000e+00> : vector<8x128xf32>
    %58 = tpu.matmul %55, %57, %cst_43 {dimension_numbers = #tpu.dot_dimension_numbers<[1], [0], [0], [1], [0, 0, 1, 1], [], []>} : vector<8x128xbf16>, vector<128x128xbf16>, vector<8x128xf32> -> vector<8x128xf32>
    %c5 = arith.constant 5 : index
    %c0_44 = arith.constant 0 : index
    %c0_45 = arith.constant 0 : index
    %59 = vector.load %arg6[%c5, %c0_44, %c0_45] : memref<6x1x128xf32, #tpu.memory_space<vmem>>, vector<1x1x128xf32>
    %60 = vector.shape_cast %59 : vector<1x1x128xf32> to vector<1x128xf32>
    %61 = vector.broadcast %60 : vector<1x128xf32> to vector<8x128xf32>
    %62 = arith.addf %58, %61 : vector<8x128xf32>
    %63 = vector.extract_strided_slice %62 {offsets = [0, 0], sizes = [8, 1], strides = [1, 1]} : vector<8x128xf32> to vector<8x1xf32>
    %c0_46 = arith.constant 0 : index
    %c0_47 = arith.constant 0 : index
    %64 = vector.load %arg7[%c0_46, %c0_47] : memref<8x1xf32, #tpu.memory_space<vmem>>, vector<8x1xf32>
    tpu.vector_store %arg7[%c0_46, %c0_47], %63 {strides = array<i32>} : memref<8x1xf32, #tpu.memory_space<vmem>>, vector<8x1xf32>,
    return
  }
  func.func @transform_0(%arg0: i32) -> (i32, i32) {
    %c0_i32 = arith.constant 0 : i32
    %c0_i32_0 = arith.constant 0 : i32
    return %arg0, %c0_i32 : i32, i32
  }
  func.func @transform_1(%arg0: i32) -> (i32, i32) {
    %c0_i32 = arith.constant 0 : i32
    %c0_i32_0 = arith.constant 0 : i32
    return %arg0, %c0_i32 : i32, i32
  }
  func.func @transform_2(%arg0: i32) -> (i32, i32) {
    %c0_i32 = arith.constant 0 : i32
    %c0_i32_0 = arith.constant 0 : i32
    %c0_i32_1 = arith.constant 0 : i32
    return %c0_i32, %c0_i32_0 : i32, i32
  }
  func.func @transform_3(%arg0: i32) -> (i32, i32) {
    %c0_i32 = arith.constant 0 : i32
    %c0_i32_0 = arith.constant 0 : i32
    %c0_i32_1 = arith.constant 0 : i32
    return %c0_i32, %c0_i32_0 : i32, i32
  }
  func.func @transform_4(%arg0: i32) -> (i32, i32, i32) {
    %c0_i32 = arith.constant 0 : i32
    %c0_i32_0 = arith.constant 0 : i32
    %c0_i32_1 = arith.constant 0 : i32
    %c0_i32_2 = arith.constant 0 : i32
    return %c0_i32, %c0_i32_0, %c0_i32_1 : i32, i32, i32
  }
  func.func @transform_5(%arg0: i32) -> (i32, i32, i32) {
    %c0_i32 = arith.constant 0 : i32
    %c0_i32_0 = arith.constant 0 : i32
    %c0_i32_1 = arith.constant 0 : i32
    %c0_i32_2 = arith.constant 0 : i32
    return %c0_i32, %c0_i32_0, %c0_i32_1 : i32, i32, i32
  }
  func.func @transform_6(%arg0: i32) -> (i32, i32) {
    %c0_i32 = arith.constant 0 : i32
    %c0_i32_0 = arith.constant 0 : i32
    return %arg0, %c0_i32 : i32, i32
  }
}

</mosaic_0001>

<llo_original>
// kernel: tpu_custom_call.1
$region0: #{tpu_custom_call.1}
  #allocation0 [shape = 'u32[]', space=smem, size = 0x4, offset = 0x4, fixed_abs, tag = 'smem constant byte address 0x4 - core index']
  #allocation1 [shape = 'u32[144,128]{1,0:T(1,128)}', space=vmem, size = 0x12000, scoped, tag = 'internal scratch']
  %s0 = inlined_call_operand.hbm [shape: f32[8,16], index: 0, kind: input, shape index: {}]
  %s1 = inlined_call_operand.hbm [shape: f32[8,64], index: 1, kind: input, shape index: {}]
  %s2 = inlined_call_operand.hbm [shape: bf16[16,128], index: 2, kind: input, shape index: {}]
  %s3 = inlined_call_operand.hbm [shape: bf16[64,128], index: 3, kind: input, shape index: {}]
  %s4 = inlined_call_operand.hbm [shape: bf16[5,128,128], index: 4, kind: input, shape index: {}]
  %s5 = inlined_call_operand.vmem [shape: f32[6,1,128], index: 5, kind: input, shape index: {}]
  %s6 = inlined_call_operand.vmem [shape: f32[8,1], index: 6, kind: output, shape index: {}]
  %s7 = sld [smem:[#allocation0]]
  $region54: #{tpu_custom_call.1} parent=0
    _
  %s9 = ssub.s32 1, %s7
  %s10 = scalar_select 0, %s9, %s7
  $region1: #{tpu_custom_call.1} parent=0
    #allocation2 [shape = 'u8[4096]{0}', space=vmem, size = 0x1000, scoped, tag = 'input window, operand 0, single buffered']
    #allocation3 [shape = 's32[1]{0}', space=sflag, size = 0x4, scoped, tag = 'scoped memory for tpu_custom_call.1']
    #allocation4 [shape = 'u8[4096]{0}', space=vmem, size = 0x1000, scoped, tag = 'input window, operand 1, single buffered']
    #allocation5 [shape = 's32[1]{0}', space=sflag, size = 0x4, scoped, tag = 'scoped memory for tpu_custom_call.1']
    #allocation6 [shape = 'u8[4096]{0}', space=vmem, size = 0x1000, scoped, tag = 'input window, operand 2, single buffered']
    #allocation7 [shape = 'u8[16384]{0}', space=vmem, size = 0x4000, scoped, tag = 'input window, operand 3, single buffered']
    #allocation8 [shape = 's32[1]{0}', space=sflag, size = 0x4, scoped, tag = 'scoped memory for tpu_custom_call.1']
    #allocation9 [shape = 'u8[163840]{0}', space=vmem, size = 0x28000, scoped, tag = 'input window, operand 4, single buffered']
    %11 = vsyncpa [#allocation3], 0
    %12 = vsyncpa [#allocation5], 0
    %13 = vsyncpa [#allocation8], 0
    // Predicated region
    $region2: #{tpu_custom_call.1} parent=1 // pred_check
      _
    $region3: #{tpu_custom_call.1} parent=1 // pred_check_branch
      %15 = sbr.rel (0) target = $region5
    $region4: #{tpu_custom_call.1} parent=1 // pred_region
      %s17 = ssub.s32 128, 128
      %18 = vsyncadd [#allocation3], %s17
      %s20 = sshll.u32 [#allocation2], 4
      %s21 = int_to_ptr.vmem [resolvable:$true] %s20
      %23 = dma.hbm_to_vmem [thread:$0]  %s0, 128, %s21, [#allocation3]
    $region5: #{tpu_custom_call.1} parent=1 // pred_fallthru
      _
    // Predicated region
    $region6: #{tpu_custom_call.1} parent=1 // pred_check
      _
    $region7: #{tpu_custom_call.1} parent=1 // pred_check_branch
      %25 = sbr.rel (0) target = $region9
    $region8: #{tpu_custom_call.1} parent=1 // pred_region
      %s27 = ssub.s32 128, 128
      %28 = vsyncadd [#allocation5], %s27
      %s30 = sshll.u32 [#allocation4], 4
      %s31 = int_to_ptr.vmem [resolvable:$true] %s30
      %33 = dma.hbm_to_vmem [thread:$0]  %s1, 128, %s31, [#allocation5]
    $region9: #{tpu_custom_call.1} parent=1 // pred_fallthru
      _
    // Predicated region
    $region10: #{tpu_custom_call.1} parent=1 // pred_check
      _
    $region11: #{tpu_custom_call.1} parent=1 // pred_check_branch
      %35 = sbr.rel (0) target = $region13
    $region12: #{tpu_custom_call.1} parent=1 // pred_region
      %s37 = ssub.s32 128, 128
      %38 = vsyncadd [#allocation5], %s37
      %s39 = sshll.u32 [#allocation6], 4
      %s40 = int_to_ptr.vmem [resolvable:$true] %s39
      %45 = dma.hbm_to_vmem [thread:$0]  %s2, 128, %s40, [#allocation5], 64, 64, 4
    $region13: #{tpu_custom_call.1} parent=1 // pred_fallthru
      _
    // Predicated region
    $region14: #{tpu_custom_call.1} parent=1 // pred_check
      _
    $region15: #{tpu_custom_call.1} parent=1 // pred_check_branch
      %47 = sbr.rel (0) target = $region17
    $region16: #{tpu_custom_call.1} parent=1 // pred_region
      %s49 = ssub.s32 512, 512
      %50 = vsyncadd [#allocation8], %s49
      %s51 = sshll.u32 [#allocation7], 4
      %s52 = int_to_ptr.vmem [resolvable:$true] %s51
      %57 = dma.hbm_to_vmem [thread:$0]  %s3, 512, %s52, [#allocation8], 64, 64, 4
    $region17: #{tpu_custom_call.1} parent=1 // pred_fallthru
      _
    // Predicated region
    $region18: #{tpu_custom_call.1} parent=1 // pred_check
      _
    $region19: #{tpu_custom_call.1} parent=1 // pred_check_branch
      %59 = sbr.rel (0) target = $region21
    $region20: #{tpu_custom_call.1} parent=1 // pred_region
      %s61 = ssub.s32 5120, 5120
      %62 = vsyncadd [#allocation8], %s61
      %s63 = sshll.u32 [#allocation9], 4
      %s64 = int_to_ptr.vmem [resolvable:$true] %s63
      %69 = dma.hbm_to_vmem [thread:$0]  %s4, 5120, %s64, [#allocation8], 64, 64, 4
    $region21: #{tpu_custom_call.1} parent=1 // pred_fallthru
      _
    // Predicated region
    $region22: #{tpu_custom_call.1} parent=1 // pred_check
      _
    $region23: #{tpu_custom_call.1} parent=1 // pred_check_branch
      %71 = sbr.rel (0) target = $region25
    $region24: #{tpu_custom_call.1} parent=1 // pred_region
      _
    $region25: #{tpu_custom_call.1} parent=1 // pred_fallthru
      _
    // Predicated region
    $region26: #{tpu_custom_call.1} parent=1 // pred_check
      _
    $region27: #{tpu_custom_call.1} parent=1 // pred_check_branch
      %73 = sbr.rel (0) target = $region29
    $region28: #{tpu_custom_call.1} parent=1 // pred_region
      %74 = dma.done [#allocation3], 128
    $region29: #{tpu_custom_call.1} parent=1 // pred_fallthru
      _
    // Predicated region
    $region30: #{tpu_custom_call.1} parent=1 // pred_check
      _
    $region31: #{tpu_custom_call.1} parent=1 // pred_check_branch
      %76 = sbr.rel (0) target = $region33
    $region32: #{tpu_custom_call.1} parent=1 // pred_region
      %77 = dma.done [#allocation5], 128
    $region33: #{tpu_custom_call.1} parent=1 // pred_fallthru
      _
    // Predicated region
    $region34: #{tpu_custom_call.1} parent=1 // pred_check
      _
    $region35: #{tpu_custom_call.1} parent=1 // pred_check_branch
      %79 = sbr.rel (0) target = $region37
    $region36: #{tpu_custom_call.1} parent=1 // pred_region
      %80 = dma.done [#allocation5], 128
    $region37: #{tpu_custom_call.1} parent=1 // pred_fallthru
      _
    // Predicated region
    $region38: #{tpu_custom_call.1} parent=1 // pred_check
      _
    $region39: #{tpu_custom_call.1} parent=1 // pred_check_branch
      %82 = sbr.rel (0) target = $region41
    $region40: #{tpu_custom_call.1} parent=1 // pred_region
      %83 = dma.done [#allocation8], 512
    $region41: #{tpu_custom_call.1} parent=1 // pred_fallthru
      _
    // Predicated region
    $region42: #{tpu_custom_call.1} parent=1 // pred_check
      _
    $region43: #{tpu_custom_call.1} parent=1 // pred_check_branch
      %85 = sbr.rel (0) target = $region45
    $region44: #{tpu_custom_call.1} parent=1 // pred_region
      %86 = dma.done [#allocation8], 5120
    $region45: #{tpu_custom_call.1} parent=1 // pred_fallthru
      _
    %v88 = vld [vmem:[#allocation2] sm:$0xff]
    %v89 = vpack.c.bf16 %v88, %v88
    %v90 = vld [vmem:[#allocation6] sm:$0xf]
    %v91 = vld [vmem:[#allocation6 + $0x4] sm:$0xf]
    %v92 = vld [vmem:[#allocation4] sm:$0xff]
    %v93 = vpack.c.bf16 %v92, %v92
    %v94 = vld [vmem:[#allocation7] sm:$0xf]
    %v95 = vld [vmem:[#allocation7 + $0x4] sm:$0xf]
    %v96 = vld [vmem:[#allocation7 + $0x8] sm:$0xf]
    %v97 = vld [vmem:[#allocation7 + $0xc] sm:$0xf]
    %v98 = vld [vmem:[#allocation7 + $0x10] sm:$0xf]
    %v99 = vld [vmem:[#allocation7 + $0x14] sm:$0xf]
    %v100 = vld [vmem:[#allocation7 + $0x18] sm:$0xf]
    %v101 = vld [vmem:[#allocation7 + $0x1c] sm:$0xf]
    %v110 = vunpack.c.l.b16 %v94
    %v111 = vunpack.c.l.b16 %v95
    %v112 = vunpack.c.l.b16 %v96
    %v113 = vunpack.c.l.b16 %v97
    %v114 = vunpack.c.l.b16 %v98
    %v115 = vunpack.c.l.b16 %v99
    %v116 = vunpack.c.l.b16 %v100
    %v117 = vunpack.c.l.b16 %v101
    %v118 = vpack.c.b16 %v111, %v110
    %v119 = vpack.c.b16 %v113, %v112
    %v120 = vpack.c.b16 %v115, %v114
    %v121 = vpack.c.b16 %v117, %v116
    %vm126 = vcmask 523264
    %v128 = vsel %vm126, %v93, 0
    %130 = vmatprep.subr.bf16.mxu0 0
    %131 = vmatpush1.bf16.msra.mxu0 0
    %132 = vmatprep.subr.bf16.mxu0 0
    %133 = vmatpush1.bf16.msra.mxu0 0
    %134 = vmatprep.subr.bf16.mxu0 0
    %135 = vmatpush1.bf16.msra.mxu0 0
    %136 = vmatprep.subr.bf16.mxu0 0
    %137 = vmatpush1.bf16.msra.mxu0 0
    %138 = vmatprep.subr.bf16.mxu0 0
    %139 = vmatpush1.bf16.msra.mxu0 %v121
    %140 = vmatprep.subr.bf16.mxu0 0
    %141 = vmatpush1.bf16.msra.mxu0 %v120
    %142 = vmatprep.subr.bf16.mxu0 0
    %143 = vmatpush1.bf16.msra.mxu0 %v119
    %144 = vmatprep.subr.bf16.mxu0 0
    %145 = vmatpush1.bf16.msra.mxu0 %v118
    %146 = vmatprep.subr.bf16.mxu0 0
    %147 = vmatpush2.bf16.msra.mxu0 0
    %148 = vmatprep.subr.bf16.mxu0 0
    %149 = vmatpush2.bf16.msra.mxu0 0
    %150 = vmatprep.subr.bf16.mxu0 0
    %151 = vmatpush2.bf16.msra.mxu0 0
    %152 = vmatprep.subr.bf16.mxu0 0
    %153 = vmatpush2.bf16.msra.mxu0 0
    %154 = vmatprep.subr.bf16.mxu0 0
    %155 = vmatpush2.bf16.msra.mxu0 0
    %156 = vmatprep.subr.bf16.mxu0 0
    %157 = vmatpush2.bf16.msra.mxu0 0
    %158 = vmatprep.subr.bf16.mxu0 0
    %159 = vmatpush2.bf16.msra.mxu0 0
    %160 = vmatprep.subr.bf16.mxu0 0
    %161 = vmatpush2.bf16.msra.mxu0 0
    %162 = vmatprep.mubr.bf16.mxu0 0
    %163 = vmatmul.mubr.bf16.gmra.mxu0 %v128
    %v164 = vpop.f32.mrf.mxu0
    %v165 = vadd.f32 0.0, %v164
    %v166 = vpop.f32.mrf.mxu0
    %v167 = vpop.f32.mrf.mxu0
    %v168 = vpop.f32.mrf.mxu0
    %169 = vdwg.mxu0
    %v172 = vunpack.c.l.b16 %v90
    %v173 = vunpack.c.l.b16 %v91
    %v174 = vpack.c.b16 %v173, %v172
    %vm176 = vcmask 130048
    %v178 = vsel %vm176, %v89, 0
    %180 = vmatprep.subr.bf16.mxu0 0
    %181 = vmatpush1.bf16.msra.mxu0 0
    %182 = vmatprep.subr.bf16.mxu0 0
    %183 = vmatpush1.bf16.msra.mxu0 0
    %184 = vmatprep.subr.bf16.mxu0 0
    %185 = vmatpush1.bf16.msra.mxu0 0
    %186 = vmatprep.subr.bf16.mxu0 0
    %187 = vmatpush1.bf16.msra.mxu0 0
    %188 = vmatprep.subr.bf16.mxu0 0
    %189 = vmatpush1.bf16.msra.mxu0 0
    %190 = vmatprep.subr.bf16.mxu0 0
    %191 = vmatpush1.bf16.msra.mxu0 0
    %192 = vmatprep.subr.bf16.mxu0 0
    %193 = vmatpush1.bf16.msra.mxu0 0
    %194 = vmatprep.subr.bf16.mxu0 0
    %195 = vmatpush1.bf16.msra.mxu0 %v174
    %196 = vmatprep.subr.bf16.mxu0 0
    %197 = vmatpush2.bf16.msra.mxu0 0
    %198 = vmatprep.subr.bf16.mxu0 0
    %199 = vmatpush2.bf16.msra.mxu0 0
    %200 = vmatprep.subr.bf16.mxu0 0
    %201 = vmatpush2.bf16.msra.mxu0 0
    %202 = vmatprep.subr.bf16.mxu0 0
    %203 = vmatpush2.bf16.msra.mxu0 0
    %204 = vmatprep.subr.bf16.mxu0 0
    %205 = vmatpush2.bf16.msra.mxu0 0
    %206 = vmatprep.subr.bf16.mxu0 0
    %207 = vmatpush2.bf16.msra.mxu0 0
    %208 = vmatprep.subr.bf16.mxu0 0
    %209 = vmatpush2.bf16.msra.mxu0 0
    %210 = vmatprep.subr.bf16.mxu0 0
    %211 = vmatpush2.bf16.msra.mxu0 0
    %212 = vmatprep.mubr.bf16.mxu0 0
    %213 = vmatmul.mubr.bf16.gmra.mxu0 %v178
    %v214 = vpop.f32.mrf.mxu0
    %v215 = vadd.f32 %v165, %v214
    %v216 = vpop.f32.mrf.mxu0
    %v217 = vpop.f32.mrf.mxu0
    %v218 = vpop.f32.mrf.mxu0
    %219 = vdwg.mxu0
    %v220 = vld [vmem:[%s5] sm:$0x1]
    %v222 = vlaneseq
    %v223 = vshrl.u32 %v222, 7
    %v224 = vsub.s32 0, %v223
    %v225 = vrot.slane %v220, %v224
    %v227 = vadd.f32 %v215, %v225
    %v228 = vmax.f32 %v227, 0.0
    %v229 = vpack.c.bf16 %v228, %v228
    %v230 = vld [vmem:[#allocation9] sm:$0xf]
    %v231 = vld [vmem:[#allocation9 + $0x4] sm:$0xf]
    %v232 = vld [vmem:[#allocation9 + $0x8] sm:$0xf]
    %v233 = vld [vmem:[#allocation9 + $0xc] sm:$0xf]
    %v234 = vld [vmem:[#allocation9 + $0x10] sm:$0xf]
    %v235 = vld [vmem:[#allocation9 + $0x14] sm:$0xf]
    %v236 = vld [vmem:[#allocation9 + $0x18] sm:$0xf]
    %v237 = vld [vmem:[#allocation9 + $0x1c] sm:$0xf]
    %v238 = vld [vmem:[#allocation9 + $0x20] sm:$0xf]
    %v239 = vld [vmem:[#allocation9 + $0x24] sm:$0xf]
    %v240 = vld [vmem:[#allocation9 + $0x28] sm:$0xf]
    %v241 = vld [vmem:[#allocation9 + $0x2c] sm:$0xf]
    %v242 = vld [vmem:[#allocation9 + $0x30] sm:$0xf]
    %v243 = vld [vmem:[#allocation9 + $0x34] sm:$0xf]
    %v244 = vld [vmem:[#allocation9 + $0x38] sm:$0xf]
    %v245 = vld [vmem:[#allocation9 + $0x3c] sm:$0xf]
    %s246 = scalar_lea.vmem %s5, 1
    %v247 = vld [vmem:[%s246] sm:$0x1]
    %v249 = vlaneseq
    %v250 = vshrl.u32 %v249, 7
    %v251 = vsub.s32 0, %v250
    %v252 = vrot.slane %v247, %v251
    %v270 = vunpack.c.l.b16 %v230
    %v271 = vunpack.c.l.b16 %v231
    %v272 = vunpack.c.l.b16 %v232
    %v273 = vunpack.c.l.b16 %v233
    %v274 = vunpack.c.l.b16 %v234
    %v275 = vunpack.c.l.b16 %v235
    %v276 = vunpack.c.l.b16 %v236
    %v277 = vunpack.c.l.b16 %v237
    %v278 = vunpack.c.l.b16 %v238
    %v279 = vunpack.c.l.b16 %v239
    %v280 = vunpack.c.l.b16 %v240
    %v281 = vunpack.c.l.b16 %v241
    %v282 = vunpack.c.l.b16 %v242
    %v283 = vunpack.c.l.b16 %v243
    %v284 = vunpack.c.l.b16 %v244
    %v285 = vunpack.c.l.b16 %v245
    %v286 = vpack.c.b16 %v271, %v270
    %v287 = vpack.c.b16 %v273, %v272
    %v288 = vpack.c.b16 %v275, %v274
    %v289 = vpack.c.b16 %v277, %v276
    %v290 = vpack.c.b16 %v279, %v278
    %v291 = vpack.c.b16 %v281, %v280
    %v292 = vpack.c.b16 %v283, %v282
    %v293 = vpack.c.b16 %v285, %v284
    %302 = vmatprep.subr.bf16.mxu0 0
    %303 = vmatpush1.bf16.msra.mxu0 %v293
    %304 = vmatprep.subr.bf16.mxu0 0
    %305 = vmatpush1.bf16.msra.mxu0 %v292
    %306 = vmatprep.subr.bf16.mxu0 0
    %307 = vmatpush1.bf16.msra.mxu0 %v291
    %308 = vmatprep.subr.bf16.mxu0 0
    %309 = vmatpush1.bf16.msra.mxu0 %v290
    %310 = vmatprep.subr.bf16.mxu0 0
    %311 = vmatpush1.bf16.msra.mxu0 %v289
    %312 = vmatprep.subr.bf16.mxu0 0
    %313 = vmatpush1.bf16.msra.mxu0 %v288
    %314 = vmatprep.subr.bf16.mxu0 0
    %315 = vmatpush1.bf16.msra.mxu0 %v287
    %316 = vmatprep.subr.bf16.mxu0 0
    %317 = vmatpush1.bf16.msra.mxu0 %v286
    %318 = vmatprep.subr.bf16.mxu0 0
    %319 = vmatpush2.bf16.msra.mxu0 0
    %320 = vmatprep.subr.bf16.mxu0 0
    %321 = vmatpush2.bf16.msra.mxu0 0
    %322 = vmatprep.subr.bf16.mxu0 0
    %323 = vmatpush2.bf16.msra.mxu0 0
    %324 = vmatprep.subr.bf16.mxu0 0
    %325 = vmatpush2.bf16.msra.mxu0 0
    %326 = vmatprep.subr.bf16.mxu0 0
    %327 = vmatpush2.bf16.msra.mxu0 0
    %328 = vmatprep.subr.bf16.mxu0 0
    %329 = vmatpush2.bf16.msra.mxu0 0
    %330 = vmatprep.subr.bf16.mxu0 0
    %331 = vmatpush2.bf16.msra.mxu0 0
    %332 = vmatprep.subr.bf16.mxu0 0
    %333 = vmatpush2.bf16.msra.mxu0 0
    %334 = vmatprep.mubr.bf16.mxu0 0
    %335 = vmatmul.mubr.bf16.gmra.mxu0 %v229
    %v336 = vpop.f32.mrf.mxu0
    %v337 = vadd.f32 %v252, %v336
    %v338 = vpop.f32.mrf.mxu0
    %v339 = vpop.f32.mrf.mxu0
    %v340 = vpop.f32.mrf.mxu0
    %341 = vdwg.mxu0
    %v342 = vmax.f32 %v337, 0.0
    %v343 = vpack.c.bf16 %v342, %v342
    %s344 = scalar_lea.vmem [#allocation9], 64
    %v345 = vld [vmem:[%s344] sm:$0xf]
    %v346 = vld [vmem:[%s344 + $0x4] sm:$0xf]
    %v347 = vld [vmem:[%s344 + $0x8] sm:$0xf]
    %v348 = vld [vmem:[%s344 + $0xc] sm:$0xf]
    %v349 = vld [vmem:[%s344 + $0x10] sm:$0xf]
    %v350 = vld [vmem:[%s344 + $0x14] sm:$0xf]
    %v351 = vld [vmem:[%s344 + $0x18] sm:$0xf]
    %v352 = vld [vmem:[%s344 + $0x1c] sm:$0xf]
    %v353 = vld [vmem:[%s344 + $0x20] sm:$0xf]
    %v354 = vld [vmem:[%s344 + $0x24] sm:$0xf]
    %v355 = vld [vmem:[%s344 + $0x28] sm:$0xf]
    %v356 = vld [vmem:[%s344 + $0x2c] sm:$0xf]
    %v357 = vld [vmem:[%s344 + $0x30] sm:$0xf]
    %v358 = vld [vmem:[%s344 + $0x34] sm:$0xf]
    %v359 = vld [vmem:[%s344 + $0x38] sm:$0xf]
    %v360 = vld [vmem:[%s344 + $0x3c] sm:$0xf]
    %s361 = scalar_lea.vmem %s5, 2
    %v362 = vld [vmem:[%s361] sm:$0x1]
    %v364 = vlaneseq
    %v365 = vshrl.u32 %v364, 7
    %v366 = vsub.s32 0, %v365
    %v367 = vrot.slane %v362, %v366
    %v385 = vunpack.c.l.b16 %v345
    %v386 = vunpack.c.l.b16 %v346
    %v387 = vunpack.c.l.b16 %v347
    %v388 = vunpack.c.l.b16 %v348
    %v389 = vunpack.c.l.b16 %v349
    %v390 = vunpack.c.l.b16 %v350
    %v391 = vunpack.c.l.b16 %v351
    %v392 = vunpack.c.l.b16 %v352
    %v393 = vunpack.c.l.b16 %v353
    %v394 = vunpack.c.l.b16 %v354
    %v395 = vunpack.c.l.b16 %v355
    %v396 = vunpack.c.l.b16 %v356
    %v397 = vunpack.c.l.b16 %v357
    %v398 = vunpack.c.l.b16 %v358
    %v399 = vunpack.c.l.b16 %v359
    %v400 = vunpack.c.l.b16 %v360
    %v401 = vpack.c.b16 %v386, %v385
    %v402 = vpack.c.b16 %v388, %v387
    %v403 = vpack.c.b16 %v390, %v389
    %v404 = vpack.c.b16 %v392, %v391
    %v405 = vpack.c.b16 %v394, %v393
    %v406 = vpack.c.b16 %v396, %v395
    %v407 = vpack.c.b16 %v398, %v397
    %v408 = vpack.c.b16 %v400, %v399
    %417 = vmatprep.subr.bf16.mxu0 0
    %418 = vmatpush1.bf16.msra.mxu0 %v408
    %419 = vmatprep.subr.bf16.mxu0 0
    %420 = vmatpush1.bf16.msra.mxu0 %v407
    %421 = vmatprep.subr.bf16.mxu0 0
    %422 = vmatpush1.bf16.msra.mxu0 %v406
    %423 = vmatprep.subr.bf16.mxu0 0
    %424 = vmatpush1.bf16.msra.mxu0 %v405
    %425 = vmatprep.subr.bf16.mxu0 0
    %426 = vmatpush1.bf16.msra.mxu0 %v404
    %427 = vmatprep.subr.bf16.mxu0 0
    %428 = vmatpush1.bf16.msra.mxu0 %v403
    %429 = vmatprep.subr.bf16.mxu0 0
    %430 = vmatpush1.bf16.msra.mxu0 %v402
    %431 = vmatprep.subr.bf16.mxu0 0
    %432 = vmatpush1.bf16.msra.mxu0 %v401
    %433 = vmatprep.subr.bf16.mxu0 0
    %434 = vmatpush2.bf16.msra.mxu0 0
    %435 = vmatprep.subr.bf16.mxu0 0
    %436 = vmatpush2.bf16.msra.mxu0 0
    %437 = vmatprep.subr.bf16.mxu0 0
    %438 = vmatpush2.bf16.msra.mxu0 0
    %439 = vmatprep.subr.bf16.mxu0 0
    %440 = vmatpush2.bf16.msra.mxu0 0
    %441 = vmatprep.subr.bf16.mxu0 0
    %442 = vmatpush2.bf16.msra.mxu0 0
    %443 = vmatprep.subr.bf16.mxu0 0
    %444 = vmatpush2.bf16.msra.mxu0 0
    %445 = vmatprep.subr.bf16.mxu0 0
    %446 = vmatpush2.bf16.msra.mxu0 0
    %447 = vmatprep.subr.bf16.mxu0 0
    %448 = vmatpush2.bf16.msra.mxu0 0
    %449 = vmatprep.mubr.bf16.mxu0 0
    %450 = vmatmul.mubr.bf16.gmra.mxu0 %v343
    %v451 = vpop.f32.mrf.mxu0
    %v452 = vadd.f32 %v367, %v451
    %v453 = vpop.f32.mrf.mxu0
    %v454 = vpop.f32.mrf.mxu0
    %v455 = vpop.f32.mrf.mxu0
    %456 = vdwg.mxu0
    %v457 = vmax.f32 %v452, 0.0
    %v458 = vpack.c.bf16 %v457, %v457
    %s459 = scalar_lea.vmem [#allocation9], 128
    %v460 = vld [vmem:[%s459] sm:$0xf]
    %v461 = vld [vmem:[%s459 + $0x4] sm:$0xf]
    %v462 = vld [vmem:[%s459 + $0x8] sm:$0xf]
    %v463 = vld [vmem:[%s459 + $0xc] sm:$0xf]
    %v464 = vld [vmem:[%s459 + $0x10] sm:$0xf]
    %v465 = vld [vmem:[%s459 + $0x14] sm:$0xf]
    %v466 = vld [vmem:[%s459 + $0x18] sm:$0xf]
    %v467 = vld [vmem:[%s459 + $0x1c] sm:$0xf]
    %v468 = vld [vmem:[%s459 + $0x20] sm:$0xf]
    %v469 = vld [vmem:[%s459 + $0x24] sm:$0xf]
    %v470 = vld [vmem:[%s459 + $0x28] sm:$0xf]
    %v471 = vld [vmem:[%s459 + $0x2c] sm:$0xf]
    %v472 = vld [vmem:[%s459 + $0x30] sm:$0xf]
    %v473 = vld [vmem:[%s459 + $0x34] sm:$0xf]
    %v474 = vld [vmem:[%s459 + $0x38] sm:$0xf]
    %v475 = vld [vmem:[%s459 + $0x3c] sm:$0xf]
    %s476 = scalar_lea.vmem %s5, 3
    %v477 = vld [vmem:[%s476] sm:$0x1]
    %v479 = vlaneseq
    %v480 = vshrl.u32 %v479, 7
    %v481 = vsub.s32 0, %v480
    %v482 = vrot.slane %v477, %v481
    %v500 = vunpack.c.l.b16 %v460
    %v501 = vunpack.c.l.b16 %v461
    %v502 = vunpack.c.l.b16 %v462
    %v503 = vunpack.c.l.b16 %v463
    %v504 = vunpack.c.l.b16 %v464
    %v505 = vunpack.c.l.b16 %v465
    %v506 = vunpack.c.l.b16 %v466
    %v507 = vunpack.c.l.b16 %v467
    %v508 = vunpack.c.l.b16 %v468
    %v509 = vunpack.c.l.b16 %v469
    %v510 = vunpack.c.l.b16 %v470
    %v511 = vunpack.c.l.b16 %v471
    %v512 = vunpack.c.l.b16 %v472
    %v513 = vunpack.c.l.b16 %v473
    %v514 = vunpack.c.l.b16 %v474
    %v515 = vunpack.c.l.b16 %v475
    %v516 = vpack.c.b16 %v501, %v500
    %v517 = vpack.c.b16 %v503, %v502
    %v518 = vpack.c.b16 %v505, %v504
    %v519 = vpack.c.b16 %v507, %v506
    %v520 = vpack.c.b16 %v509, %v508
    %v521 = vpack.c.b16 %v511, %v510
    %v522 = vpack.c.b16 %v513, %v512
    %v523 = vpack.c.b16 %v515, %v514
    %532 = vmatprep.subr.bf16.mxu0 0
    %533 = vmatpush1.bf16.msra.mxu0 %v523
    %534 = vmatprep.subr.bf16.mxu0 0
    %535 = vmatpush1.bf16.msra.mxu0 %v522
    %536 = vmatprep.subr.bf16.mxu0 0
    %537 = vmatpush1.bf16.msra.mxu0 %v521
    %538 = vmatprep.subr.bf16.mxu0 0
    %539 = vmatpush1.bf16.msra.mxu0 %v520
    %540 = vmatprep.subr.bf16.mxu0 0
    %541 = vmatpush1.bf16.msra.mxu0 %v519
    %542 = vmatprep.subr.bf16.mxu0 0
    %543 = vmatpush1.bf16.msra.mxu0 %v518
    %544 = vmatprep.subr.bf16.mxu0 0
    %545 = vmatpush1.bf16.msra.mxu0 %v517
    %546 = vmatprep.subr.bf16.mxu0 0
    %547 = vmatpush1.bf16.msra.mxu0 %v516
    %548 = vmatprep.subr.bf16.mxu0 0
    %549 = vmatpush2.bf16.msra.mxu0 0
    %550 = vmatprep.subr.bf16.mxu0 0
    %551 = vmatpush2.bf16.msra.mxu0 0
    %552 = vmatprep.subr.bf16.mxu0 0
    %553 = vmatpush2.bf16.msra.mxu0 0
    %554 = vmatprep.subr.bf16.mxu0 0
    %555 = vmatpush2.bf16.msra.mxu0 0
    %556 = vmatprep.subr.bf16.mxu0 0
    %557 = vmatpush2.bf16.msra.mxu0 0
    %558 = vmatprep.subr.bf16.mxu0 0
    %559 = vmatpush2.bf16.msra.mxu0 0
    %560 = vmatprep.subr.bf16.mxu0 0
    %561 = vmatpush2.bf16.msra.mxu0 0
    %562 = vmatprep.subr.bf16.mxu0 0
    %563 = vmatpush2.bf16.msra.mxu0 0
    %564 = vmatprep.mubr.bf16.mxu0 0
    %565 = vmatmul.mubr.bf16.gmra.mxu0 %v458
    %v566 = vpop.f32.mrf.mxu0
    %v567 = vadd.f32 %v482, %v566
    %v568 = vpop.f32.mrf.mxu0
    %v569 = vpop.f32.mrf.mxu0
    %v570 = vpop.f32.mrf.mxu0
    %571 = vdwg.mxu0
    %v572 = vmax.f32 %v567, 0.0
    %v573 = vpack.c.bf16 %v572, %v572
    %s574 = scalar_lea.vmem [#allocation9], 192
    %v575 = vld [vmem:[%s574] sm:$0xf]
    %v576 = vld [vmem:[%s574 + $0x4] sm:$0xf]
    %v577 = vld [vmem:[%s574 + $0x8] sm:$0xf]
    %v578 = vld [vmem:[%s574 + $0xc] sm:$0xf]
    %v579 = vld [vmem:[%s574 + $0x10] sm:$0xf]
    %v580 = vld [vmem:[%s574 + $0x14] sm:$0xf]
    %v581 = vld [vmem:[%s574 + $0x18] sm:$0xf]
    %v582 = vld [vmem:[%s574 + $0x1c] sm:$0xf]
    %v583 = vld [vmem:[%s574 + $0x20] sm:$0xf]
    %v584 = vld [vmem:[%s574 + $0x24] sm:$0xf]
    %v585 = vld [vmem:[%s574 + $0x28] sm:$0xf]
    %v586 = vld [vmem:[%s574 + $0x2c] sm:$0xf]
    %v587 = vld [vmem:[%s574 + $0x30] sm:$0xf]
    %v588 = vld [vmem:[%s574 + $0x34] sm:$0xf]
    %v589 = vld [vmem:[%s574 + $0x38] sm:$0xf]
    %v590 = vld [vmem:[%s574 + $0x3c] sm:$0xf]
    %s591 = scalar_lea.vmem %s5, 4
    %v592 = vld [vmem:[%s591] sm:$0x1]
    %v594 = vlaneseq
    %v595 = vshrl.u32 %v594, 7
    %v596 = vsub.s32 0, %v595
    %v597 = vrot.slane %v592, %v596
    %v615 = vunpack.c.l.b16 %v575
    %v616 = vunpack.c.l.b16 %v576
    %v617 = vunpack.c.l.b16 %v577
    %v618 = vunpack.c.l.b16 %v578
    %v619 = vunpack.c.l.b16 %v579
    %v620 = vunpack.c.l.b16 %v580
    %v621 = vunpack.c.l.b16 %v581
    %v622 = vunpack.c.l.b16 %v582
    %v623 = vunpack.c.l.b16 %v583
    %v624 = vunpack.c.l.b16 %v584
    %v625 = vunpack.c.l.b16 %v585
    %v626 = vunpack.c.l.b16 %v586
    %v627 = vunpack.c.l.b16 %v587
    %v628 = vunpack.c.l.b16 %v588
    %v629 = vunpack.c.l.b16 %v589
    %v630 = vunpack.c.l.b16 %v590
    %v631 = vpack.c.b16 %v616, %v615
    %v632 = vpack.c.b16 %v618, %v617
    %v633 = vpack.c.b16 %v620, %v619
    %v634 = vpack.c.b16 %v622, %v621
    %v635 = vpack.c.b16 %v624, %v623
    %v636 = vpack.c.b16 %v626, %v625
    %v637 = vpack.c.b16 %v628, %v627
    %v638 = vpack.c.b16 %v630, %v629
    %647 = vmatprep.subr.bf16.mxu0 0
    %648 = vmatpush1.bf16.msra.mxu0 %v638
    %649 = vmatprep.subr.bf16.mxu0 0
    %650 = vmatpush1.bf16.msra.mxu0 %v637
    %651 = vmatprep.subr.bf16.mxu0 0
    %652 = vmatpush1.bf16.msra.mxu0 %v636
    %653 = vmatprep.subr.bf16.mxu0 0
    %654 = vmatpush1.bf16.msra.mxu0 %v635
    %655 = vmatprep.subr.bf16.mxu0 0
    %656 = vmatpush1.bf16.msra.mxu0 %v634
    %657 = vmatprep.subr.bf16.mxu0 0
    %658 = vmatpush1.bf16.msra.mxu0 %v633
    %659 = vmatprep.subr.bf16.mxu0 0
    %660 = vmatpush1.bf16.msra.mxu0 %v632
    %661 = vmatprep.subr.bf16.mxu0 0
    %662 = vmatpush1.bf16.msra.mxu0 %v631
    %663 = vmatprep.subr.bf16.mxu0 0
    %664 = vmatpush2.bf16.msra.mxu0 0
    %665 = vmatprep.subr.bf16.mxu0 0
    %666 = vmatpush2.bf16.msra.mxu0 0
    %667 = vmatprep.subr.bf16.mxu0 0
    %668 = vmatpush2.bf16.msra.mxu0 0
    %669 = vmatprep.subr.bf16.mxu0 0
    %670 = vmatpush2.bf16.msra.mxu0 0
    %671 = vmatprep.subr.bf16.mxu0 0
    %672 = vmatpush2.bf16.msra.mxu0 0
    %673 = vmatprep.subr.bf16.mxu0 0
    %674 = vmatpush2.bf16.msra.mxu0 0
    %675 = vmatprep.subr.bf16.mxu0 0
    %676 = vmatpush2.bf16.msra.mxu0 0
    %677 = vmatprep.subr.bf16.mxu0 0
    %678 = vmatpush2.bf16.msra.mxu0 0
    %679 = vmatprep.mubr.bf16.mxu0 0
    %680 = vmatmul.mubr.bf16.gmra.mxu0 %v573
    %v681 = vpop.f32.mrf.mxu0
    %v682 = vadd.f32 %v597, %v681
    %v683 = vpop.f32.mrf.mxu0
    %v684 = vpop.f32.mrf.mxu0
    %v685 = vpop.f32.mrf.mxu0
    %686 = vdwg.mxu0
    %v687 = vmax.f32 %v682, 0.0
    %v688 = vpack.c.bf16 %v687, %v687
    %s689 = scalar_lea.vmem [#allocation9], 256
    %v690 = vld [vmem:[%s689] sm:$0xf]
    %v691 = vld [vmem:[%s689 + $0x4] sm:$0xf]
    %v692 = vld [vmem:[%s689 + $0x8] sm:$0xf]
    %v693 = vld [vmem:[%s689 + $0xc] sm:$0xf]
    %v694 = vld [vmem:[%s689 + $0x10] sm:$0xf]
    %v695 = vld [vmem:[%s689 + $0x14] sm:$0xf]
    %v696 = vld [vmem:[%s689 + $0x18] sm:$0xf]
    %v697 = vld [vmem:[%s689 + $0x1c] sm:$0xf]
    %v698 = vld [vmem:[%s689 + $0x20] sm:$0xf]
    %v699 = vld [vmem:[%s689 + $0x24] sm:$0xf]
    %v700 = vld [vmem:[%s689 + $0x28] sm:$0xf]
    %v701 = vld [vmem:[%s689 + $0x2c] sm:$0xf]
    %v702 = vld [vmem:[%s689 + $0x30] sm:$0xf]
    %v703 = vld [vmem:[%s689 + $0x34] sm:$0xf]
    %v704 = vld [vmem:[%s689 + $0x38] sm:$0xf]
    %v705 = vld [vmem:[%s689 + $0x3c] sm:$0xf]
    %s706 = scalar_lea.vmem %s5, 5
    %v707 = vld [vmem:[%s706] sm:$0x1]
    %v709 = vlaneseq
    %v710 = vshrl.u32 %v709, 7
    %v711 = vsub.s32 0, %v710
    %v712 = vrot.slane %v707, %v711
    %v730 = vunpack.c.l.b16 %v690
    %v731 = vunpack.c.l.b16 %v691
    %v732 = vunpack.c.l.b16 %v692
    %v733 = vunpack.c.l.b16 %v693
    %v734 = vunpack.c.l.b16 %v694
    %v735 = vunpack.c.l.b16 %v695
    %v736 = vunpack.c.l.b16 %v696
    %v737 = vunpack.c.l.b16 %v697
    %v738 = vunpack.c.l.b16 %v698
    %v739 = vunpack.c.l.b16 %v699
    %v740 = vunpack.c.l.b16 %v700
    %v741 = vunpack.c.l.b16 %v701
    %v742 = vunpack.c.l.b16 %v702
    %v743 = vunpack.c.l.b16 %v703
    %v744 = vunpack.c.l.b16 %v704
    %v745 = vunpack.c.l.b16 %v705
    %v746 = vpack.c.b16 %v731, %v730
    %v747 = vpack.c.b16 %v733, %v732
    %v748 = vpack.c.b16 %v735, %v734
    %v749 = vpack.c.b16 %v737, %v736
    %v750 = vpack.c.b16 %v739, %v738
    %v751 = vpack.c.b16 %v741, %v740
    %v752 = vpack.c.b16 %v743, %v742
    %v753 = vpack.c.b16 %v745, %v744
    %762 = vmatprep.subr.bf16.mxu0 0
    %763 = vmatpush1.bf16.msra.mxu0 %v753
    %764 = vmatprep.subr.bf16.mxu0 0
    %765 = vmatpush1.bf16.msra.mxu0 %v752
    %766 = vmatprep.subr.bf16.mxu0 0
    %767 = vmatpush1.bf16.msra.mxu0 %v751
    %768 = vmatprep.subr.bf16.mxu0 0
    %769 = vmatpush1.bf16.msra.mxu0 %v750
    %770 = vmatprep.subr.bf16.mxu0 0
    %771 = vmatpush1.bf16.msra.mxu0 %v749
    %772 = vmatprep.subr.bf16.mxu0 0
    %773 = vmatpush1.bf16.msra.mxu0 %v748
    %774 = vmatprep.subr.bf16.mxu0 0
    %775 = vmatpush1.bf16.msra.mxu0 %v747
    %776 = vmatprep.subr.bf16.mxu0 0
    %777 = vmatpush1.bf16.msra.mxu0 %v746
    %778 = vmatprep.subr.bf16.mxu0 0
    %779 = vmatpush2.bf16.msra.mxu0 0
    %780 = vmatprep.subr.bf16.mxu0 0
    %781 = vmatpush2.bf16.msra.mxu0 0
    %782 = vmatprep.subr.bf16.mxu0 0
    %783 = vmatpush2.bf16.msra.mxu0 0
    %784 = vmatprep.subr.bf16.mxu0 0
    %785 = vmatpush2.bf16.msra.mxu0 0
    %786 = vmatprep.subr.bf16.mxu0 0
    %787 = vmatpush2.bf16.msra.mxu0 0
    %788 = vmatprep.subr.bf16.mxu0 0
    %789 = vmatpush2.bf16.msra.mxu0 0
    %790 = vmatprep.subr.bf16.mxu0 0
    %791 = vmatpush2.bf16.msra.mxu0 0
    %792 = vmatprep.subr.bf16.mxu0 0
    %793 = vmatpush2.bf16.msra.mxu0 0
    %794 = vmatprep.mubr.bf16.mxu0 0
    %795 = vmatmul.mubr.bf16.gmra.mxu0 %v688
    %v796 = vpop.f32.mrf.mxu0
    %v797 = vadd.f32 %v712, %v796
    %v798 = vpop.f32.mrf.mxu0
    %v799 = vpop.f32.mrf.mxu0
    %v800 = vpop.f32.mrf.mxu0
    %801 = vdwg.mxu0
    %vm802 = vcmask 7168
    %803 = vst.msk [vmem:[%s6] sm:$0xff] %vm802, %v797
    // Predicated region
    $region46: #{tpu_custom_call.1} parent=1 // pred_check
      _
    $region47: #{tpu_custom_call.1} parent=1 // pred_check_branch
      %805 = sbr.rel (0) target = $region49
    $region48: #{tpu_custom_call.1} parent=1 // pred_region
      _
    $region49: #{tpu_custom_call.1} parent=1 // pred_fallthru
      _
    // Predicated region
    $region50: #{tpu_custom_call.1} parent=1 // pred_check
      _
    $region51: #{tpu_custom_call.1} parent=1 // pred_check_branch
      %807 = sbr.rel (0) target = $region53
    $region52: #{tpu_custom_call.1} parent=1 // pred_region
      _
    $region53: #{tpu_custom_call.1} parent=1 // pred_fallthru
      _
    %808 = vsyncpa [#allocation3], 1
    %809 = vsyncpa [#allocation5], 1
    %810 = vsyncpa [#allocation8], 1

</llo_original>
